<compile_context>
chip_gen: v7x
topology: tpu7x:2x2x1
jax: 0.10.0
libtpu: 0.0.40
codegen_flags: <defaults>
</compile_context>

<pallas_src>
import functools

import jax
import jax.numpy as jnp
from jax.experimental import pallas as pl
from jax.experimental.pallas import tpu as pltpu


def _ts_attention_kernel(k0_ref, w2_ref, sel_ref, pool_ref, poolt_ref,
                         x_ref, o_ref, *, Nb):
    """One grid step processes Nb samples.

    k0_ref   : SMEM (1,)       f32   a + b*bf + c*bt  (mix + conv biases folded)
    w2_ref   : VMEM (2, C)     f32   [ (b/W)*wf ; (c/H)*wt ]
    sel_ref  : VMEM (2, H+W)   f32   [[1]*H+[0]*W , [0]*H+[1]*W]
    pool_ref : VMEM (HW, H+W)  f32   0/1: column p<H selects row p, column H+w selects col w
    poolt_ref: VMEM (H+W, HW)  f32   transpose of pool (broadcast-back)
    x_ref    : VMEM (Nb, C, HW)      lane-dense input block
    o_ref    : VMEM (Nb, C, HW)      lane-dense output block
    """
    k0 = k0_ref[0]
    w2 = w2_ref[...]
    sel = sel_ref[...]
    pool = pool_ref[...]
    poolt = poolt_ref[...]

    def body(n, carry):
        xn = x_ref[n].astype(jnp.float32)                                   # (C, HW)
        # Both 1x1 convs (mix / mean factors folded into the weights), on the MXU.
        y = jnp.dot(w2, xn, preferred_element_type=jnp.float32)             # (2, HW)
        # Row sums (freq branch) and column sums (time branch) via one pooling matmul.
        s = jnp.dot(y, pool, preferred_element_type=jnp.float32)            # (2, H+W)
        g = jnp.sum(s * sel, axis=0, keepdims=True)                         # (1, H+W)
        # Broadcast the H row-gates / W col-gates back onto the flat HW lane axis.
        scale = k0 + jnp.dot(g, poolt, preferred_element_type=jnp.float32)  # (1, HW)
        o_ref[n] = (xn * scale).astype(o_ref.dtype)
        return carry

    jax.lax.fori_loop(0, Nb, body, 0)


def _round_up(v, m):
    return -(-v // m) * m


def _vmem_block_bytes(shape, dtype):
    """VMEM footprint of a >=2-D block including (sublane, 128) tile padding."""
    dt = jnp.dtype(dtype)
    sublane = max(8, 32 // dt.itemsize)        # 8 for f32, 16 for bf16, 32 for int8
    lead = 1
    for d in shape[:-2]:
        lead *= d
    return lead * _round_up(shape[-2], sublane) * _round_up(shape[-1], 128) * dt.itemsize


@functools.partial(jax.jit, static_argnames=("block_bytes_target",))
def ts_attention(x, wf, bf, wt, bt, mix_weights, *, block_bytes_target=6 << 20):
    """x: (N, C, H, W); wf/wt: (C,); bf/bt: (); mix_weights: (3,)."""
    N, C, H, W = x.shape
    HW = H * W
    f32 = jnp.float32

    abc = jax.nn.softmax(mix_weights.astype(f32))
    a, b, c = abc[0], abc[1], abc[2]
    k0 = jnp.reshape(a + b * bf.astype(f32) + c * bt.astype(f32), (1,))
    w2 = jnp.stack([(b / W) * wf.astype(f32), (c / H) * wt.astype(f32)])     # (2, C)

    # Host-built 0/1 pooling matrices (fused AvgPool + broadcast as matmuls).
    # NOTE: dense (HW, H+W); fine for spectrogram-sized inputs, grows as HW*(H+W).
    e = jnp.arange(HW, dtype=jnp.int32)
    p_row = (e[:, None] // W == jnp.arange(H, dtype=jnp.int32)[None, :]).astype(f32)
    p_col = (e[:, None] % W == jnp.arange(W, dtype=jnp.int32)[None, :]).astype(f32)
    pool = jnp.concatenate([p_row, p_col], axis=1)                           # (HW, H+W)
    poolt = pool.T                                                           # (H+W, HW)
    sel = jnp.stack([
        jnp.concatenate([jnp.ones((H,), f32), jnp.zeros((W,), f32)]),
        jnp.concatenate([jnp.zeros((H,), f32), jnp.ones((W,), f32)])])       # (2, H+W)

    # ---- block sizing (padded to (sublane,128) tiles) ----
    sample_bytes = _vmem_block_bytes((1, C, HW), x.dtype)
    divisors = [d for d in range(1, N + 1) if N % d == 0]
    fitting = [d for d in divisors if d * sample_bytes <= block_bytes_target]
    if fitting:
        Nb = max(fitting)
        multi = [d for d in fitting if N // d >= 2]
        # Expose >=2 grid steps (pipelining / megacore) only if blocks stay >=1 MiB.
        if multi and max(multi) * sample_bytes >= (1 << 20):
            Nb = max(multi)
    else:
        # TODO(synk): add a C-blocked two-pass fallback when a single sample exceeds
        # the VMEM block budget (very large C*H*W); a lone oversized block may not
        # double-buffer inside v7x's 64 MiB VMEM.
        Nb = 1
    grid = (N // Nb,)

    block_bytes = Nb * sample_bytes
    const_bytes = (_vmem_block_bytes((2, C), f32) + _vmem_block_bytes((2, H + W), f32)
                   + _vmem_block_bytes((HW, H + W), f32) + _vmem_block_bytes((H + W, HW), f32))
    # in + out blocks double-buffered + resident constants + slack; keep under v7x 64 MiB.
    vmem_limit = 4 * block_bytes + 2 * const_bytes + (4 << 20)
    vmem_limit = int(min(60 << 20, max(16 << 20, vmem_limit)))

    itemsize = jnp.dtype(x.dtype).itemsize
    cost = pl.CostEstimate(
        flops=int(N * HW * (4 * C + 6 * (H + W)) + 2 * N * C * HW),
        transcendentals=0,
        bytes_accessed=int(2 * N * C * HW * itemsize))

    x_flat = x.reshape(N, C, HW)                            # free, lane-dense view
    kernel = functools.partial(_ts_attention_kernel, Nb=Nb)

    out_flat = pl.pallas_call(
        kernel,
        out_shape=jax.ShapeDtypeStruct((N, C, HW), x.dtype),
        grid=grid,
        in_specs=[
            pl.BlockSpec(memory_space=pltpu.MemorySpace.SMEM),     # k0 scalar
            pl.BlockSpec((2, C), lambda i: (0, 0)),                # folded conv weights
            pl.BlockSpec((2, H + W), lambda i: (0, 0)),            # branch selection mask
            pl.BlockSpec((HW, H + W), lambda i: (0, 0)),           # pooling matrix
            pl.BlockSpec((H + W, HW), lambda i: (0, 0)),           # pooling matrix^T
            pl.BlockSpec((Nb, C, HW), lambda i: (i, 0, 0)),        # x (Nb samples/step)
        ],
        out_specs=pl.BlockSpec((Nb, C, HW), lambda i: (i, 0, 0)),
        compiler_params=pltpu.CompilerParams(
            dimension_semantics=("parallel",),
            vmem_limit_bytes=vmem_limit),
        cost_estimate=cost,
    )(k0, w2, sel, pool, poolt, x_flat)
    return out_flat.reshape(N, C, H, W)


def ts_attention_reference(x, wf, bf, wt, bt, mix_weights):
    abc = jax.nn.softmax(mix_weights)
    s_f = jnp.einsum('nchw,c->nhw', x, wf) + bf             # 1x1 conv, freq branch
    s_t = jnp.einsum('nchw,c->nhw', x, wt) + bt             # 1x1 conv, time branch
    freq = jnp.mean(s_f, axis=2, keepdims=True)[:, None]    # (N,1,H,1)
    time = jnp.mean(s_t, axis=1, keepdims=True)[:, None]    # (N,1,1,W)
    return abc[0] * x + abc[1] * (freq * x) + abc[2] * (time * x)


if __name__ == "__main__":
    N, C, H, W = 2, 4, 16, 16

    key = jax.random.PRNGKey(0)
    kx, kwf, kbf, kwt, kbt = jax.random.split(key, 5)
    x = jax.random.normal(kx, (N, C, H, W), dtype=jnp.float32)
    # Deterministic synthetic parameters (module's weights_init is external; we only
    # need deterministic values of the right shapes).
    wf = jax.random.normal(kwf, (C,), dtype=jnp.float32) * 0.1
    bf = jax.random.normal(kbf, (), dtype=jnp.float32) * 0.1
    wt = jax.random.normal(kwt, (C,), dtype=jnp.float32) * 0.1
    bt = jax.random.normal(kbt, (), dtype=jnp.float32) * 0.1
    mix = jnp.array([1.0 / 3, 1.0 / 3, 1.0 / 3], dtype=jnp.float32)  # nn.Parameter init

    out = ts_attention(x, wf, bf, wt, bt, mix)
    jax.block_until_ready(out)

    ref = ts_attention_reference(x, wf, bf, wt, bt, mix)
    assert out.shape == ref.shape and out.dtype == ref.dtype
    assert jnp.allclose(out, ref, atol=5e-4, rtol=5e-4), "Pallas kernel mismatch vs reference"
    print("KERNEL_OK")
</pallas_src>

<mosaic_0001>
module attributes {stable_mosaic.version = 11 : i64} {
  func.func @_ts_attention_kernel(%arg0: i32, %arg1: memref<1xf32, #tpu.memory_space<smem>>, %arg2: memref<2x4xf32, #tpu.memory_space<vmem>>, %arg3: memref<2x32xf32, #tpu.memory_space<vmem>>, %arg4: memref<256x32xf32, #tpu.memory_space<vmem>>, %arg5: memref<32x256xf32, #tpu.memory_space<vmem>>, %arg6: memref<2x4x256xf32, #tpu.memory_space<vmem>>, %arg7: memref<2x4x256xf32, #tpu.memory_space<vmem>>) attributes {dimension_semantics = [#tpu.dimension_semantics<parallel>], iteration_bounds = array<i64: 1>, scalar_prefetch = 0 : i64, scratch_operands = 0 : i64, tpu.core_type = #tpu.core_type<tc>, window_params = [{transform_indices = @transform_0, window_bounds = array<i64: 1>}, {pipeline_mode = #tpu.pipeline_mode<synchronous>, transform_indices = @transform_1, window_bounds = array<i64: 2, 4>}, {pipeline_mode = #tpu.pipeline_mode<synchronous>, transform_indices = @transform_2, window_bounds = array<i64: 2, 32>}, {pipeline_mode = #tpu.pipeline_mode<synchronous>, transform_indices = @transform_3, window_bounds = array<i64: 256, 32>}, {pipeline_mode = #tpu.pipeline_mode<synchronous>, transform_indices = @transform_4, window_bounds = array<i64: 32, 256>}, {transform_indices = @transform_5, window_bounds = array<i64: 2, 4, 256>}, {transform_indices = @transform_6, window_bounds = array<i64: 2, 4, 256>}]} {
    %c0 = arith.constant 0 : index
    %0 = memref.load %arg1[%c0] : memref<1xf32, #tpu.memory_space<smem>>
    %c0_0 = arith.constant 0 : index
    %c0_1 = arith.constant 0 : index
    %1 = vector.load %arg2[%c0_0, %c0_1] : memref<2x4xf32, #tpu.memory_space<vmem>>, vector<2x4xf32>
    %c0_2 = arith.constant 0 : index
    %c0_3 = arith.constant 0 : index
    %2 = vector.load %arg3[%c0_2, %c0_3] : memref<2x32xf32, #tpu.memory_space<vmem>>, vector<2x32xf32>
    %c0_4 = arith.constant 0 : index
    %c0_5 = arith.constant 0 : index
    %3 = vector.load %arg4[%c0_4, %c0_5] : memref<256x32xf32, #tpu.memory_space<vmem>>, vector<256x32xf32>
    %c0_6 = arith.constant 0 : index
    %c0_7 = arith.constant 0 : index
    %4 = vector.load %arg5[%c0_6, %c0_7] : memref<32x256xf32, #tpu.memory_space<vmem>>, vector<32x256xf32>
    %c0_i32 = arith.constant 0 : i32
    %c2_i32 = arith.constant 2 : i32
    %5 = arith.addi %c0_i32, %c2_i32 : i32
    %c1_i32 = arith.constant 1 : i32
    scf.for %arg8 = %c0_i32 to %5 step %c1_i32  : i32 {
      %6 = arith.index_cast %arg8 : i32 to index
      %c0_9 = arith.constant 0 : index
      %c0_10 = arith.constant 0 : index
      %7 = vector.load %arg6[%6, %c0_9, %c0_10] : memref<2x4x256xf32, #tpu.memory_space<vmem>>, vector<1x4x256xf32>
      %8 = vector.shape_cast %7 : vector<1x4x256xf32> to vector<4x256xf32>
      %cst = arith.constant dense<0.000000e+00> : vector<2x256xf32>
      %9 = tpu.matmul %1, %8, %cst {dimension_numbers = #tpu.dot_dimension_numbers<[1], [0], [0], [1], [0, 0, 1, 1], [], []>} : vector<2x4xf32>, vector<4x256xf32>, vector<2x256xf32> -> vector<2x256xf32>
      %cst_11 = arith.constant dense<0.000000e+00> : vector<2x32xf32>
      %10 = tpu.matmul %9, %3, %cst_11 {dimension_numbers = #tpu.dot_dimension_numbers<[1], [0], [0], [1], [0, 0, 1, 1], [], []>} : vector<2x256xf32>, vector<256x32xf32>, vector<2x32xf32> -> vector<2x32xf32>
      %11 = arith.mulf %10, %2 : vector<2x32xf32>
      %cst_12 = arith.constant dense<0.000000e+00> : vector<32xf32>
      %12 = vector.multi_reduction <add>, %11, %cst_12 [0] : vector<2x32xf32> to vector<32xf32>
      %13 = vector.shape_cast %12 : vector<32xf32> to vector<1x32xf32>
      %cst_13 = arith.constant dense<0.000000e+00> : vector<1x256xf32>
      %14 = tpu.matmul %13, %4, %cst_13 {dimension_numbers = #tpu.dot_dimension_numbers<[1], [0], [0], [1], [0, 0, 1, 1], [], []>} : vector<1x32xf32>, vector<32x256xf32>, vector<1x256xf32> -> vector<1x256xf32>
      %15 = vector.broadcast %0 : f32 to vector<1x256xf32>
      %16 = arith.addf %15, %14 : vector<1x256xf32>
      %17 = vector.broadcast %16 : vector<1x256xf32> to vector<4x256xf32>
      %18 = arith.mulf %8, %17 : vector<4x256xf32>
      %19 = arith.index_cast %arg8 : i32 to index
      %c0_14 = arith.constant 0 : index
      %c0_15 = arith.constant 0 : index
      %20 = vector.load %arg7[%19, %c0_14, %c0_15] : memref<2x4x256xf32, #tpu.memory_space<vmem>>, vector<1x4x256xf32>
      %21 = vector.shape_cast %20 : vector<1x4x256xf32> to vector<4x256xf32>
      %22 = vector.shape_cast %18 : vector<4x256xf32> to vector<1x4x256xf32>
      tpu.vector_store %arg7[%19, %c0_14, %c0_15], %22 {strides = array<i32>} : memref<2x4x256xf32, #tpu.memory_space<vmem>>, vector<1x4x256xf32>,
    }
    %c2_i32_8 = arith.constant 2 : i32
    return
  }
  func.func @transform_0(%arg0: i32) -> i32 {
    %c0_i32 = arith.constant 0 : i32
    %c0_i32_0 = arith.constant 0 : i32
    return %c0_i32 : i32
  }
  func.func @transform_1(%arg0: i32) -> (i32, i32) {
    %c0_i32 = arith.constant 0 : i32
    %c0_i32_0 = arith.constant 0 : i32
    %c0_i32_1 = arith.constant 0 : i32
    return %c0_i32, %c0_i32_0 : i32, i32
  }
  func.func @transform_2(%arg0: i32) -> (i32, i32) {
    %c0_i32 = arith.constant 0 : i32
    %c0_i32_0 = arith.constant 0 : i32
    %c0_i32_1 = arith.constant 0 : i32
    return %c0_i32, %c0_i32_0 : i32, i32
  }
  func.func @transform_3(%arg0: i32) -> (i32, i32) {
    %c0_i32 = arith.constant 0 : i32
    %c0_i32_0 = arith.constant 0 : i32
    %c0_i32_1 = arith.constant 0 : i32
    return %c0_i32, %c0_i32_0 : i32, i32
  }
  func.func @transform_4(%arg0: i32) -> (i32, i32) {
    %c0_i32 = arith.constant 0 : i32
    %c0_i32_0 = arith.constant 0 : i32
    %c0_i32_1 = arith.constant 0 : i32
    return %c0_i32, %c0_i32_0 : i32, i32
  }
  func.func @transform_5(%arg0: i32) -> (i32, i32, i32) {
    %c0_i32 = arith.constant 0 : i32
    %c0_i32_0 = arith.constant 0 : i32
    %c0_i32_1 = arith.constant 0 : i32
    return %arg0, %c0_i32, %c0_i32_0 : i32, i32, i32
  }
  func.func @transform_6(%arg0: i32) -> (i32, i32, i32) {
    %c0_i32 = arith.constant 0 : i32
    %c0_i32_0 = arith.constant 0 : i32
    %c0_i32_1 = arith.constant 0 : i32
    return %arg0, %c0_i32, %c0_i32_0 : i32, i32, i32
  }
}

</mosaic_0001>

<llo_original>
// kernel: ts_attention.1
$region0: #{ts_attention.1}
  #allocation0 [shape = 'u32[]', space=smem, size = 0x4, offset = 0x4, fixed_abs, tag = 'smem constant byte address 0x4 - core index']
  #allocation1 [shape = 'u32[144,128]{1,0:T(1,128)}', space=vmem, size = 0x12000, scoped, tag = 'internal scratch']
  #allocation2 [shape = 'f32[1]{0:T(128)S(6)}', space=smem, size = 0x200, scoped, tag = 'scoped memory for ts_attention.1']
  %s0 = inlined_call_operand.<no memory space> [shape: f32[1], index: 0, kind: input, shape index: {}]
  %s1 = inlined_call_operand.vmem [shape: f32[2,4], index: 1, kind: input, shape index: {}]
  %s2 = inlined_call_operand.vmem [shape: f32[2,32], index: 2, kind: input, shape index: {}]
  %s3 = inlined_call_operand.vmem [shape: f32[256,32], index: 3, kind: input, shape index: {}]
  %s4 = inlined_call_operand.vmem [shape: f32[32,256], index: 4, kind: input, shape index: {}]
  %s5 = inlined_call_operand.vmem [shape: f32[2,4,256], index: 5, kind: input, shape index: {}]
  %s6 = inlined_call_operand.vmem [shape: f32[2,4,256], index: 6, kind: output, shape index: {}]
  %s7 = sld [smem:[#allocation0]]
  $region41: #{ts_attention.1} parent=0
    _
  %s9 = ssub.s32 1, %s7
  %s10 = scalar_select 0, %s9, %s7
  %11 = sst [smem:[#allocation2]] %s0
  // Predicated region
  $region2: #{ts_attention.1} parent=0 // pred_check
    _
  $region3: #{ts_attention.1} parent=0 // pred_check_branch
    %13 = sbr.rel (0) target = $region5
  $region4: #{ts_attention.1} parent=0 // pred_region
    _
  $region5: #{ts_attention.1} parent=0 // pred_fallthru
    _
  // Predicated region
  $region6: #{ts_attention.1} parent=0 // pred_check
    _
  $region7: #{ts_attention.1} parent=0 // pred_check_branch
    %15 = sbr.rel (0) target = $region9
  $region8: #{ts_attention.1} parent=0 // pred_region
    _
  $region9: #{ts_attention.1} parent=0 // pred_fallthru
    _
  // Predicated region
  $region10: #{ts_attention.1} parent=0 // pred_check
    _
  $region11: #{ts_attention.1} parent=0 // pred_check_branch
    %17 = sbr.rel (0) target = $region13
  $region12: #{ts_attention.1} parent=0 // pred_region
    _
  $region13: #{ts_attention.1} parent=0 // pred_fallthru
    _
  // Predicated region
  $region14: #{ts_attention.1} parent=0 // pred_check
    _
  $region15: #{ts_attention.1} parent=0 // pred_check_branch
    %19 = sbr.rel (0) target = $region17
  $region16: #{ts_attention.1} parent=0 // pred_region
    _
  $region17: #{ts_attention.1} parent=0 // pred_fallthru
    _
  // Predicated region
  $region18: #{ts_attention.1} parent=0 // pred_check
    _
  $region19: #{ts_attention.1} parent=0 // pred_check_branch
    %21 = sbr.rel (0) target = $region21
  $region20: #{ts_attention.1} parent=0 // pred_region
    _
  $region21: #{ts_attention.1} parent=0 // pred_fallthru
    _
  // Predicated region
  $region22: #{ts_attention.1} parent=0 // pred_check
    _
  $region23: #{ts_attention.1} parent=0 // pred_check_branch
    %23 = sbr.rel (0) target = $region25
  $region24: #{ts_attention.1} parent=0 // pred_region
    _
  $region25: #{ts_attention.1} parent=0 // pred_fallthru
    _
  %s24 = sld [smem:[#allocation2]]
  %v25 = vld [vmem:[%s1] sm:$0x3]
  %v26 = vld [vmem:[%s2] sm:$0x3]
  %v27 = vld [vmem:[%s3] sm:$0xff]
  %v28 = vld [vmem:[%s3 + $0x8] sm:$0xff]
  %v29 = vld [vmem:[%s3 + $0x10] sm:$0xff]
  %v30 = vld [vmem:[%s3 + $0x18] sm:$0xff]
  %v31 = vld [vmem:[%s3 + $0x20] sm:$0xff]
  %v32 = vld [vmem:[%s3 + $0x28] sm:$0xff]
  %v33 = vld [vmem:[%s3 + $0x30] sm:$0xff]
  %v34 = vld [vmem:[%s3 + $0x38] sm:$0xff]
  %v35 = vld [vmem:[%s3 + $0x40] sm:$0xff]
  %v36 = vld [vmem:[%s3 + $0x48] sm:$0xff]
  %v37 = vld [vmem:[%s3 + $0x50] sm:$0xff]
  %v38 = vld [vmem:[%s3 + $0x58] sm:$0xff]
  %v39 = vld [vmem:[%s3 + $0x60] sm:$0xff]
  %v40 = vld [vmem:[%s3 + $0x68] sm:$0xff]
  %v41 = vld [vmem:[%s3 + $0x70] sm:$0xff]
  %v42 = vld [vmem:[%s3 + $0x78] sm:$0xff]
  %v43 = vld [vmem:[%s3 + $0x80] sm:$0xff]
  %v44 = vld [vmem:[%s3 + $0x88] sm:$0xff]
  %v45 = vld [vmem:[%s3 + $0x90] sm:$0xff]
  %v46 = vld [vmem:[%s3 + $0x98] sm:$0xff]
  %v47 = vld [vmem:[%s3 + $0xa0] sm:$0xff]
  %v48 = vld [vmem:[%s3 + $0xa8] sm:$0xff]
  %v49 = vld [vmem:[%s3 + $0xb0] sm:$0xff]
  %v50 = vld [vmem:[%s3 + $0xb8] sm:$0xff]
  %v51 = vld [vmem:[%s3 + $0xc0] sm:$0xff]
  %v52 = vld [vmem:[%s3 + $0xc8] sm:$0xff]
  %v53 = vld [vmem:[%s3 + $0xd0] sm:$0xff]
  %v54 = vld [vmem:[%s3 + $0xd8] sm:$0xff]
  %v55 = vld [vmem:[%s3 + $0xe0] sm:$0xff]
  %v56 = vld [vmem:[%s3 + $0xe8] sm:$0xff]
  %v57 = vld [vmem:[%s3 + $0xf0] sm:$0xff]
  %v58 = vld [vmem:[%s3 + $0xf8] sm:$0xff]
  %v59 = vld [vmem:[%s4] sm:$0xff]
  %v60 = vld [vmem:[%s4 + $0x8] sm:$0xff]
  %v61 = vld [vmem:[%s4 + $0x10] sm:$0xff]
  %v62 = vld [vmem:[%s4 + $0x18] sm:$0xff]
  %v63 = vld [vmem:[%s4 + $0x20] sm:$0xff]
  %v64 = vld [vmem:[%s4 + $0x28] sm:$0xff]
  %v65 = vld [vmem:[%s4 + $0x30] sm:$0xff]
  %v66 = vld [vmem:[%s4 + $0x38] sm:$0xff]
  loop: start=0, step=1, limit=2
  $region26: #{ts_attention.1} parent=0 // loop_pre_header
    _
  $region27: #{ts_attention.1} parent=0 // loop_header
    %s68 = sphi 0, %s72
    %p69 = scmp.ge.s32.totalorder %s68, 2
  $region28: #{ts_attention.1} parent=0 // loop_header_branch
    %71 = sbr.rel (%p69) target = $region32
  $region29: #{ts_attention.1} parent=0 // loop_body
    %s73 = smul.u32 %s68, 2
    %s74 = smul.addr %s73, 4
    %s75 = scalar_lea.vmem %s5, %s74
    %v76 = vld [vmem:[%s75] sm:$0xff]
    %v78 = vcombine.high %v76, %v76
    %vm79 = vcmask 31744
    %v81 = vsel %vm79, %v25, 0
    %vm83 = vcmask 1043456
    %v84 = vsel %vm83, %v76, 0
    %v86 = vsel %vm83, %v78, 0
    %88 = vmatprep.subr.mxu0 %v86
    %89 = vmatpush1.msra.mxu0 %v84
    %90 = vmatprep.subr.mxu0 0.0
    %91 = vmatpush1.msra.mxu0 0.0
    %92 = vmatprep.subr.mxu0 0.0
    %93 = vmatpush1.msra.mxu0 0.0
    %94 = vmatprep.subr.mxu0 0.0
    %95 = vmatpush1.msra.mxu0 0.0
    %96 = vmatprep.subr.mxu0 0.0
    %97 = vmatpush1.msra.mxu0 0.0
    %98 = vmatprep.subr.mxu0 0.0
    %99 = vmatpush1.msra.mxu0 0.0
    %100 = vmatprep.subr.mxu0 0.0
    %101 = vmatpush1.msra.mxu0 0.0
    %102 = vmatprep.subr.mxu0 0.0
    %103 = vmatpush1.msra.mxu0 0.0
    %104 = vmatprep.subr.mxu0 0.0
    %105 = vmatpush1.msra.mxu0 0.0
    %106 = vmatprep.subr.mxu0 0.0
    %107 = vmatpush1.msra.mxu0 0.0
    %108 = vmatprep.subr.mxu0 0.0
    %109 = vmatpush1.msra.mxu0 0.0
    %110 = vmatprep.subr.mxu0 0.0
    %111 = vmatpush1.msra.mxu0 0.0
    %112 = vmatprep.subr.mxu0 0.0
    %113 = vmatpush1.msra.mxu0 0.0
    %114 = vmatprep.subr.mxu0 0.0
    %115 = vmatpush1.msra.mxu0 0.0
    %116 = vmatprep.subr.mxu0 0.0
    %117 = vmatpush1.msra.mxu0 0.0
    %118 = vmatprep.subr.mxu0 0.0
    %119 = vmatpush1.msra.mxu0 0.0
    %120 = vmatprep.subr.mxu0 0.0
    %121 = vmatpush1.msra.mxu0 0.0
    %122 = vmatprep.subr.mxu0 0.0
    %123 = vmatpush1.msra.mxu0 0.0
    %124 = vmatprep.subr.mxu0 0.0
    %125 = vmatpush1.msra.mxu0 0.0
    %126 = vmatprep.subr.mxu0 0.0
    %127 = vmatpush1.msra.mxu0 0.0
    %128 = vmatprep.subr.mxu0 0.0
    %129 = vmatpush1.msra.mxu0 0.0
    %130 = vmatprep.subr.mxu0 0.0
    %131 = vmatpush1.msra.mxu0 0.0
    %132 = vmatprep.subr.mxu0 0.0
    %133 = vmatpush1.msra.mxu0 0.0
    %134 = vmatprep.subr.mxu0 0.0
    %135 = vmatpush1.msra.mxu0 0.0
    %136 = vmatprep.subr.mxu0 0.0
    %137 = vmatpush1.msra.mxu0 0.0
    %138 = vmatprep.subr.mxu0 0.0
    %139 = vmatpush1.msra.mxu0 0.0
    %140 = vmatprep.subr.mxu0 0.0
    %141 = vmatpush1.msra.mxu0 0.0
    %142 = vmatprep.subr.mxu0 0.0
    %143 = vmatpush1.msra.mxu0 0.0
    %144 = vmatprep.subr.mxu0 0.0
    %145 = vmatpush1.msra.mxu0 0.0
    %146 = vmatprep.subr.mxu0 0.0
    %147 = vmatpush1.msra.mxu0 0.0
    %148 = vmatprep.subr.mxu0 0.0
    %149 = vmatpush1.msra.mxu0 0.0
    %150 = vmatprep.subr.mxu0 0.0
    %151 = vmatpush1.msra.mxu0 0.0
    %152 = vmatprep.mubr.f32.mxu0 0.0
    %153 = vmatmul.mubr.f32.gmra.mrb[0].mxu0 %v81
    %v154 = vpop.f32.mrb[0].mxu0
    %v155 = vadd.f32 0.0, %v154
    %v156 = vpop.f32.mrb[0].mxu0
    %v157 = vadd.f32 0.0, %v156
    %158 = vdwg.mxu0
    %159 = vmatprep.subr.mxu0 0.0
    %160 = vmatpush1.msra.mxu0 %v27
    %161 = vmatprep.subr.mxu0 0.0
    %162 = vmatpush1.msra.mxu0 %v28
    %163 = vmatprep.subr.mxu0 0.0
    %164 = vmatpush1.msra.mxu0 %v29
    %165 = vmatprep.subr.mxu0 0.0
    %166 = vmatpush1.msra.mxu0 %v30
    %167 = vmatprep.subr.mxu0 0.0
    %168 = vmatpush1.msra.mxu0 %v31
    %169 = vmatprep.subr.mxu0 0.0
    %170 = vmatpush1.msra.mxu0 %v32
    %171 = vmatprep.subr.mxu0 0.0
    %172 = vmatpush1.msra.mxu0 %v33
    %173 = vmatprep.subr.mxu0 0.0
    %174 = vmatpush1.msra.mxu0 %v34
    %175 = vmatprep.subr.mxu0 0.0
    %176 = vmatpush1.msra.mxu0 %v35
    %177 = vmatprep.subr.mxu0 0.0
    %178 = vmatpush1.msra.mxu0 %v36
    %179 = vmatprep.subr.mxu0 0.0
    %180 = vmatpush1.msra.mxu0 %v37
    %181 = vmatprep.subr.mxu0 0.0
    %182 = vmatpush1.msra.mxu0 %v38
    %183 = vmatprep.subr.mxu0 0.0
    %184 = vmatpush1.msra.mxu0 %v39
    %185 = vmatprep.subr.mxu0 0.0
    %186 = vmatpush1.msra.mxu0 %v40
    %187 = vmatprep.subr.mxu0 0.0
    %188 = vmatpush1.msra.mxu0 %v41
    %189 = vmatprep.subr.mxu0 0.0
    %190 = vmatpush1.msra.mxu0 %v42
    %191 = vmatprep.subr.mxu0 0.0
    %192 = vmatpush1.msra.mxu0 %v43
    %193 = vmatprep.subr.mxu0 0.0
    %194 = vmatpush1.msra.mxu0 %v44
    %195 = vmatprep.subr.mxu0 0.0
    %196 = vmatpush1.msra.mxu0 %v45
    %197 = vmatprep.subr.mxu0 0.0
    %198 = vmatpush1.msra.mxu0 %v46
    %199 = vmatprep.subr.mxu0 0.0
    %200 = vmatpush1.msra.mxu0 %v47
    %201 = vmatprep.subr.mxu0 0.0
    %202 = vmatpush1.msra.mxu0 %v48
    %203 = vmatprep.subr.mxu0 0.0
    %204 = vmatpush1.msra.mxu0 %v49
    %205 = vmatprep.subr.mxu0 0.0
    %206 = vmatpush1.msra.mxu0 %v50
    %207 = vmatprep.subr.mxu0 0.0
    %208 = vmatpush1.msra.mxu0 %v51
    %209 = vmatprep.subr.mxu0 0.0
    %210 = vmatpush1.msra.mxu0 %v52
    %211 = vmatprep.subr.mxu0 0.0
    %212 = vmatpush1.msra.mxu0 %v53
    %213 = vmatprep.subr.mxu0 0.0
    %214 = vmatpush1.msra.mxu0 %v54
    %215 = vmatprep.subr.mxu0 0.0
    %216 = vmatpush1.msra.mxu0 %v55
    %217 = vmatprep.subr.mxu0 0.0
    %218 = vmatpush1.msra.mxu0 %v56
    %219 = vmatprep.subr.mxu0 0.0
    %220 = vmatpush1.msra.mxu0 %v57
    %221 = vmatprep.subr.mxu0 0.0
    %222 = vmatpush1.msra.mxu0 %v58
    %223 = vmatprep.mubr.f32.mxu0 %v157
    %224 = vmatmul.mubr.f32.gmra.mrb[0].mxu0 %v155
    %v225 = vpop.f32.mrb[0].mxu0
    %v226 = vadd.f32 0.0, %v225
    %v227 = vpop.f32.mrb[0].mxu0
    %228 = vdwg.mxu0
    %v229 = vmul.f32 %v226, %v26
    %vm230 = vcmask 254976
    %v231 = vsel %vm230, %v229, 0.0
    %v232 = vrot.slane %v231, 4
    %v233 = vadd.f32 %v231, %v232
    %v234 = vrot.slane %v233, 2
    %v235 = vadd.f32 %v233, %v234
    %v236 = vrot.slane %v235, 1
    %v237 = vadd.f32 %v235, %v236
    %vm238 = vcmask 261120
    %v240 = vsel %vm238, %v237, 0
    %242 = vmatprep.subr.mxu0 %v60
    %243 = vmatpush1.msra.mxu0 %v59
    %244 = vmatprep.subr.mxu0 %v62
    %245 = vmatpush1.msra.mxu0 %v61
    %246 = vmatprep.subr.mxu0 %v64
    %247 = vmatpush1.msra.mxu0 %v63
    %248 = vmatprep.subr.mxu0 %v66
    %249 = vmatpush1.msra.mxu0 %v65
    %250 = vmatprep.subr.mxu0 0.0
    %251 = vmatpush1.msra.mxu0 0.0
    %252 = vmatprep.subr.mxu0 0.0
    %253 = vmatpush1.msra.mxu0 0.0
    %254 = vmatprep.subr.mxu0 0.0
    %255 = vmatpush1.msra.mxu0 0.0
    %256 = vmatprep.subr.mxu0 0.0
    %257 = vmatpush1.msra.mxu0 0.0
    %258 = vmatprep.subr.mxu0 0.0
    %259 = vmatpush1.msra.mxu0 0.0
    %260 = vmatprep.subr.mxu0 0.0
    %261 = vmatpush1.msra.mxu0 0.0
    %262 = vmatprep.subr.mxu0 0.0
    %263 = vmatpush1.msra.mxu0 0.0
    %264 = vmatprep.subr.mxu0 0.0
    %265 = vmatpush1.msra.mxu0 0.0
    %266 = vmatprep.subr.mxu0 0.0
    %267 = vmatpush1.msra.mxu0 0.0
    %268 = vmatprep.subr.mxu0 0.0
    %269 = vmatpush1.msra.mxu0 0.0
    %270 = vmatprep.subr.mxu0 0.0
    %271 = vmatpush1.msra.mxu0 0.0
    %272 = vmatprep.subr.mxu0 0.0
    %273 = vmatpush1.msra.mxu0 0.0
    %274 = vmatprep.subr.mxu0 0.0
    %275 = vmatpush1.msra.mxu0 0.0
    %276 = vmatprep.subr.mxu0 0.0
    %277 = vmatpush1.msra.mxu0 0.0
    %278 = vmatprep.subr.mxu0 0.0
    %279 = vmatpush1.msra.mxu0 0.0
    %280 = vmatprep.subr.mxu0 0.0
    %281 = vmatpush1.msra.mxu0 0.0
    %282 = vmatprep.subr.mxu0 0.0
    %283 = vmatpush1.msra.mxu0 0.0
    %284 = vmatprep.subr.mxu0 0.0
    %285 = vmatpush1.msra.mxu0 0.0
    %286 = vmatprep.subr.mxu0 0.0
    %287 = vmatpush1.msra.mxu0 0.0
    %288 = vmatprep.subr.mxu0 0.0
    %289 = vmatpush1.msra.mxu0 0.0
    %290 = vmatprep.subr.mxu0 0.0
    %291 = vmatpush1.msra.mxu0 0.0
    %292 = vmatprep.subr.mxu0 0.0
    %293 = vmatpush1.msra.mxu0 0.0
    %294 = vmatprep.subr.mxu0 0.0
    %295 = vmatpush1.msra.mxu0 0.0
    %296 = vmatprep.subr.mxu0 0.0
    %297 = vmatpush1.msra.mxu0 0.0
    %298 = vmatprep.subr.mxu0 0.0
    %299 = vmatpush1.msra.mxu0 0.0
    %300 = vmatprep.subr.mxu0 0.0
    %301 = vmatpush1.msra.mxu0 0.0
    %302 = vmatprep.subr.mxu0 0.0
    %303 = vmatpush1.msra.mxu0 0.0
    %304 = vmatprep.subr.mxu0 0.0
    %305 = vmatpush1.msra.mxu0 0.0
    %306 = vmatprep.mubr.f32.mxu0 0.0
    %307 = vmatmul.mubr.f32.gmra.mrb[0].mxu0 %v240
    %v308 = vpop.f32.mrb[0].mxu0
    %v309 = vadd.f32 0.0, %v308
    %v310 = vpop.f32.mrb[0].mxu0
    %v311 = vadd.f32 0.0, %v310
    %312 = vdwg.mxu0
    %v313 = vstv %s24
    %v314 = vadd.f32 %v313, %v309
    %v315 = vadd.f32 %v313, %v311
    %v316 = vlaneseq
    %v317 = vshrl.u32 %v316, 7
    %v318 = vsub.s32 0, %v317
    %v319 = vrot.slane %v314, %v318
    %v320 = vlaneseq
    %v321 = vshrl.u32 %v320, 7
    %v322 = vsub.s32 0, %v321
    %v323 = vrot.slane %v315, %v322
    %v326 = vcombine.low %v319, %v323
    %v328 = vmul.f32 %v76, %v326
    %s329 = smul.addr %s73, 4
    %s330 = scalar_lea.vmem %s6, %s329
    %331 = vst [vmem:[%s330] sm:$0xff] %v328
  $region30: #{ts_attention.1} parent=0 // loop_footer
    %s72 = sadd.s32 1, %s68
  $region31: #{ts_attention.1} parent=0 // loop_footer_branch
    %67 = sbr.rel target = $region27
  $region32: #{ts_attention.1} parent=0 // loop_exit
    _
  // Predicated region
  $region33: #{ts_attention.1} parent=0 // pred_check
    _
  $region34: #{ts_attention.1} parent=0 // pred_check_branch
    %333 = sbr.rel (0) target = $region36
  $region35: #{ts_attention.1} parent=0 // pred_region
    _
  $region36: #{ts_attention.1} parent=0 // pred_fallthru
    _
  // Predicated region
  $region37: #{ts_attention.1} parent=0 // pred_check
    _
  $region38: #{ts_attention.1} parent=0 // pred_check_branch
    %335 = sbr.rel (0) target = $region40
  $region39: #{ts_attention.1} parent=0 // pred_region
    _
  $region40: #{ts_attention.1} parent=0 // pred_fallthru
    _

</llo_original>
